<compile_context>
chip_gen: v7x
topology: tpu7x:2x2x1
jax: 0.10.0
libtpu: 0.0.40
codegen_flags: <defaults>
</compile_context>

<pallas_src>
import functools
import math

import jax
import jax.numpy as jnp
from jax.experimental import pallas as pl
from jax.experimental.pallas import tpu as pltpu


def _choose_blocks(n_tokens, n_rows, step_size, itemsize, *,
                   vmem_budget_bytes=32 * 1024 * 1024,
                   target_lane_elems=2048,
                   min_grid_steps=8):
    """Pick (TT, TR): tokens per step and rows per step.

    Constraints / preferences (dtype-aware, per review):
      * sublane quantum: 8 for 4-byte, 16 for 2-byte, 32 for 1-byte dtypes,
      * lane dims (TT*S for input, TR*S for output) multiples of 128,
        unless the block spans the full array dim (always legal),
      * double-buffered in + out tiles (~4 * TR * TT * S * itemsize) fit a
        budget that is safe on v7x's 64 MiB physical VMEM,
      * TT*S targets ~target_lane_elems lanes (long contiguous DMA bursts),
      * keep >= min_grid_steps grid steps along tokens when T allows it
        (pipelining overlap + megacore sharding).
    """
    sub = max(8, 32 // max(1, itemsize))                 # sublane quantum
    lane_q = 128 // math.gcd(step_size, 128)             # block*S % 128 == 0
    quant = sub * lane_q // math.gcd(sub, lane_q)        # satisfies both
    bytes_per_rowtok = step_size * itemsize

    # ---- rows per step (TR) ----
    # Bound TR so that even a minimal quant-wide token block double-buffers
    # within the budget; full n_rows is always a legal block shape.
    tr_cap = max(quant, vmem_budget_bytes // (4 * quant * bytes_per_rowtok))
    if n_rows <= tr_cap:
        tr = n_rows
    else:
        tr = max(quant, (tr_cap // quant) * quant)

    # ---- tokens per step (TT) ----
    tt_cap = min(max(1, target_lane_elems // step_size),
                 max(1, vmem_budget_bytes // (4 * tr * bytes_per_rowtok)))
    steps_cap = n_tokens // min_grid_steps
    if steps_cap >= quant:          # only keep >=min_grid_steps if still aligned
        tt_cap = min(tt_cap, steps_cap)
    if n_tokens <= max(tt_cap, quant):
        tt = n_tokens               # full dim: always legal, grid dim becomes 1
    else:
        tt = max(quant, (min(tt_cap, n_tokens) // quant) * quant)
    return tt, tr


def _condition_kernel(c_ref, o_ref, *, step_size):
    # c_ref: (TR, TT*S) lane-dense input tile (TT*S contiguous samples / row)
    # o_ref: (TT, TR*S) lane-dense output tile (one row per token)
    x = c_ref[...]
    tr = x.shape[0]
    tt = x.shape[1] // step_size
    # Single tiled relayout (replaces the O(TT*TR) slice+concat of the previous
    # revision): split the lane axis into (token, sample), swap token with the
    # row axis, and merge (row, sample) back into a dense lane axis.
    y = x.reshape(tr, tt, step_size)          # (TR, TT, S)
    y = jnp.transpose(y, (1, 0, 2))           # (TT, TR, S)
    # Store the relayout result directly (no hand-assembled full-tile value).
    o_ref[...] = y.reshape(tt, tr * step_size)
    # TODO(synk): for sub-32-bit dtypes with S*itemsize % 4 == 0, bitcast S
    # samples into 32-bit words before the relayout (and back after) to cut
    # the number of lanes the XLU moves by 2x (bf16) / 4x (fp8).


def condition_network_forward(c, step_size):
    """Pallas implementation of ConditionNetwork.forward.

    c: (B, C, L) array, L % step_size == 0
    returns: (L // step_size, B, C * step_size)
    """
    B, C, L = c.shape
    if L % step_size != 0:
        raise Exception("Length is not divisible by step size")
    T = L // step_size
    D = C * step_size
    n_rows = B * C
    itemsize = jnp.dtype(c.dtype).itemsize

    TT, TR = _choose_blocks(T, n_rows, step_size, itemsize)

    # Free row-major re-layouts on the wrapper side: the kernel sees the input
    # as (B*C, L) and writes the output as (T, B*C*S); the final reshape back
    # to (T, B, C*S) is metadata only.
    c2 = c.reshape(n_rows, L)

    grid = (pl.cdiv(T, TT), pl.cdiv(n_rows, TR))
    kernel = functools.partial(_condition_kernel, step_size=step_size)

    out_flat = pl.pallas_call(
        kernel,
        out_shape=jax.ShapeDtypeStruct((T, n_rows * step_size), c.dtype),
        grid=grid,
        in_specs=[
            # Token block i, row block j reads rows [j*TR, (j+1)*TR) and
            # columns [i*TT*S, (i+1)*TT*S): contiguous in HBM per row.
            pl.BlockSpec((TR, TT * step_size), lambda i, j: (j, i)),
            # TODO(synk): sweep pipeline_mode=pl.Buffered(3) here if profiles
            # show exposed input-DMA wait after the relayout fix.
        ],
        # Output columns [j*TR*S, (j+1)*TR*S) are contiguous per token row.
        out_specs=pl.BlockSpec((TT, TR * step_size), lambda i, j: (i, j)),
        compiler_params=pltpu.CompilerParams(
            # Every (token block, row block) is independent -> both parallel
            # (lets v7x shard the grid across its two TensorCores).
            dimension_semantics=("parallel", "parallel"),
            # Tiles are budgeted to <=32 MiB double-buffered; 48 MiB scoped
            # VMEM is safe on v7x (64 MiB physical) and ample on v5e/v6e.
            vmem_limit_bytes=48 * 1024 * 1024,
        ),
        # Pure permutation: 0 flops, read + write the whole array once.
        cost_estimate=pl.CostEstimate(
            flops=0,
            transcendentals=0,
            bytes_accessed=2 * B * C * L * itemsize,
        ),
    )(c2)

    return out_flat.reshape(T, B, D)


def _reference_forward(c, step_size):
    B, C, L = c.shape
    r = jnp.reshape(c, (B, C, -1, step_size))             # (B, C, T, S)
    r = jnp.transpose(r, (2, 0, 1, 3))                    # (T, B, C, S)
    return jnp.reshape(r, (r.shape[0], r.shape[1], -1))   # (T, B, C*S)


if __name__ == "__main__":
    # Module hyperparameters (small, consistent with the module's constraints).
    length = 16
    in_channels = 4
    step_size = 4
    steps_per_token = 2          # only affects n_token/d_model metadata
    batch = 2

    # n_token / d_model metadata (not used by forward, kept for fidelity).
    d_model = step_size * steps_per_token * in_channels
    n_token = length // step_size - steps_per_token + 1

    key = jax.random.PRNGKey(0)
    c = jax.random.normal(key, (batch, in_channels, length), dtype=jnp.float32)

    out = condition_network_forward(c, step_size)
    out = jax.block_until_ready(out)

    ref = _reference_forward(c, step_size)
    assert out.shape == (length // step_size, batch, in_channels * step_size), out.shape
    assert jnp.allclose(out, ref), "Pallas output mismatch vs reference"

    print("KERNEL_OK")
</pallas_src>

<mosaic_0001>
module attributes {stable_mosaic.version = 11 : i64} {
  func.func @_condition_kernel(%arg0: i32, %arg1: i32, %arg2: memref<8x16xf32, #tpu.memory_space<vmem>>, %arg3: memref<4x32xf32, #tpu.memory_space<vmem>>) attributes {dimension_semantics = [#tpu.dimension_semantics<parallel>, #tpu.dimension_semantics<parallel>], iteration_bounds = array<i64: 1, 1>, scalar_prefetch = 0 : i64, scratch_operands = 0 : i64, tpu.core_type = #tpu.core_type<tc>, window_params = [{transform_indices = @transform_0, window_bounds = array<i64: 8, 16>}, {transform_indices = @transform_1, window_bounds = array<i64: 4, 32>}]} {
    %c0 = arith.constant 0 : index
    %c0_0 = arith.constant 0 : index
    %0 = vector.load %arg2[%c0, %c0_0] : memref<8x16xf32, #tpu.memory_space<vmem>>, vector<8x16xf32>
    %1 = vector.shape_cast %0 : vector<8x16xf32> to vector<8x4x4xf32>
    %2 = tpu.transpose %1, [1, 0, 2] : vector<8x4x4xf32> -> vector<4x8x4xf32>
    %3 = vector.shape_cast %2 : vector<4x8x4xf32> to vector<4x32xf32>
    %c0_1 = arith.constant 0 : index
    %c0_2 = arith.constant 0 : index
    %4 = vector.load %arg3[%c0_1, %c0_2] : memref<4x32xf32, #tpu.memory_space<vmem>>, vector<4x32xf32>
    tpu.vector_store %arg3[%c0_1, %c0_2], %3 {strides = array<i32>} : memref<4x32xf32, #tpu.memory_space<vmem>>, vector<4x32xf32>,
    return
  }
  func.func @transform_0(%arg0: i32, %arg1: i32) -> (i32, i32) {
    %c0_i32 = arith.constant 0 : i32
    return %arg1, %arg0 : i32, i32
  }
  func.func @transform_1(%arg0: i32, %arg1: i32) -> (i32, i32) {
    %c0_i32 = arith.constant 0 : i32
    return %arg0, %arg1 : i32, i32
  }
}

</mosaic_0001>

<llo_original>
// kernel: tpu_custom_call.1
$region0: #{tpu_custom_call.1}
  #allocation0 [shape = 'u32[]', space=smem, size = 0x4, offset = 0x4, fixed_abs, tag = 'smem constant byte address 0x4 - core index']
  #allocation1 [shape = 'u32[144,128]{1,0:T(1,128)}', space=vmem, size = 0x12000, scoped, tag = 'internal scratch']
  %s0 = inlined_call_operand.hbm [shape: f32[8,16], index: 0, kind: input, shape index: {}]
  %s1 = inlined_call_operand.hbm [shape: f32[4,32], index: 1, kind: output, shape index: {}]
  %s2 = sld [smem:[#allocation0]]
  $region18: #{tpu_custom_call.1} parent=0
    _
  %s4 = ssub.s32 1, %s2
  %s5 = scalar_select 0, %s4, %s2
  $region1: #{tpu_custom_call.1} parent=0
    #allocation2 [shape = 'u8[4096]{0}', space=vmem, size = 0x1000, scoped, tag = 'input window, operand 0, single buffered']
    #allocation3 [shape = 's32[1]{0}', space=sflag, size = 0x4, scoped, tag = 'scoped memory for tpu_custom_call.1']
    #allocation4 [shape = 's32[1]{0}', space=sflag, size = 0x4, scoped, tag = 'scoped memory for tpu_custom_call.1']
    #allocation5 [shape = 'u8[2048]{0}', space=vmem, size = 0x800, scoped, tag = 'output window, operand 0, single buffered']
    %6 = vsyncpa [#allocation3], 0
    %7 = vsyncpa [#allocation4], 0
    // Predicated region
    $region2: #{tpu_custom_call.1} parent=1 // pred_check
      _
    $region3: #{tpu_custom_call.1} parent=1 // pred_check_branch
      %9 = sbr.rel (0) target = $region5
    $region4: #{tpu_custom_call.1} parent=1 // pred_region
      %s11 = ssub.s32 128, 128
      %12 = vsyncadd [#allocation3], %s11
      %s14 = sshll.u32 [#allocation2], 4
      %s15 = int_to_ptr.vmem [resolvable:$true] %s14
      %17 = dma.hbm_to_vmem [thread:$0]  %s0, 128, %s15, [#allocation3]
    $region5: #{tpu_custom_call.1} parent=1 // pred_fallthru
      _
    // Predicated region
    $region6: #{tpu_custom_call.1} parent=1 // pred_check
      _
    $region7: #{tpu_custom_call.1} parent=1 // pred_check_branch
      %19 = sbr.rel (0) target = $region9
    $region8: #{tpu_custom_call.1} parent=1 // pred_region
      %20 = dma.done [#allocation3], 128
    $region9: #{tpu_custom_call.1} parent=1 // pred_fallthru
      _
    %v21 = vld [vmem:[#allocation2] sm:$0xff]
    %23 = vrot.lane.b32.xlu0 %v21, 124
    %v24 = vpop.permute.xlu0 %23
    %26 = vrot.lane.b32.xlu0 %v21, 120
    %v27 = vpop.permute.xlu0 %26
    %29 = vrot.lane.b32.xlu0 %v21, 116
    %v30 = vpop.permute.xlu0 %29
    %v32 = vcombine.low %v21, %v27
    %v33 = vcombine.high %v21, %v27
    %v35 = vunpack.c.l.s4 1983009808
    %v36 = vunpack.c.0.s8 %v35
    %v37 = vlaneseq
    %v38 = vshrl.u32 %v37, 7
    %v39 = vsub.s32 %v36, %v38
    %v40 = vrot.slane %v32, %v39
    %v42 = vunpack.c.l.s4 1983009808
    %v43 = vunpack.c.0.s8 %v42
    %v44 = vlaneseq
    %v45 = vshrl.u32 %v44, 7
    %v46 = vsub.s32 %v43, %v45
    %v47 = vrot.slane %v33, %v46
    %v48 = vcombine.low %v24, %v30
    %v49 = vcombine.high %v24, %v30
    %v51 = vunpack.c.l.s4 1983009808
    %v52 = vunpack.c.0.s8 %v51
    %v53 = vlaneseq
    %v54 = vshrl.u32 %v53, 7
    %v55 = vsub.s32 %v52, %v54
    %v56 = vrot.slane %v48, %v55
    %v58 = vunpack.c.l.s4 1983009808
    %v59 = vunpack.c.0.s8 %v58
    %v60 = vlaneseq
    %v61 = vshrl.u32 %v60, 7
    %v62 = vsub.s32 %v59, %v61
    %v63 = vrot.slane %v49, %v62
    %v64 = vcombine.low %v40, %v56
    %v65 = vcombine.high %v40, %v56
    %v67 = vunpack.c.l.s4 1934713408
    %v68 = vunpack.c.0.s8 %v67
    %v69 = vlaneseq
    %v70 = vshrl.u32 %v69, 7
    %v71 = vsub.s32 %v68, %v70
    %v72 = vrot.slane %v64, %v71
    %v74 = vunpack.c.l.s4 1934713408
    %v75 = vunpack.c.0.s8 %v74
    %v76 = vlaneseq
    %v77 = vshrl.u32 %v76, 7
    %v78 = vsub.s32 %v75, %v77
    %v79 = vrot.slane %v65, %v78
    %v80 = vcombine.low %v47, %v63
    %v81 = vcombine.high %v47, %v63
    %v83 = vunpack.c.l.s4 1934713408
    %v84 = vunpack.c.0.s8 %v83
    %v85 = vlaneseq
    %v86 = vshrl.u32 %v85, 7
    %v87 = vsub.s32 %v84, %v86
    %v88 = vrot.slane %v80, %v87
    %v90 = vunpack.c.l.s4 1934713408
    %v91 = vunpack.c.0.s8 %v90
    %v92 = vlaneseq
    %v93 = vshrl.u32 %v92, 7
    %v94 = vsub.s32 %v91, %v93
    %v95 = vrot.slane %v81, %v94
    %v96 = vcombine.high %v72, 0.0
    %v97 = vcombine.high %v79, 0.0
    %v98 = vcombine.high %v88, 0.0
    %v99 = vcombine.high %v95, 0.0
    %v100 = vcombine.low %v72, %v79
    %v102 = vunpack.c.l.s4 1983009808
    %v103 = vunpack.c.0.s8 %v102
    %v104 = vlaneseq
    %v105 = vshrl.u32 %v104, 7
    %v106 = vsub.s32 %v103, %v105
    %v107 = vrot.slane %v100, %v106
    %v108 = vcombine.low %v96, %v97
    %v110 = vunpack.c.l.s4 1983009808
    %v111 = vunpack.c.0.s8 %v110
    %v112 = vlaneseq
    %v113 = vshrl.u32 %v112, 7
    %v114 = vsub.s32 %v111, %v113
    %v115 = vrot.slane %v108, %v114
    %v116 = vcombine.low %v88, %v95
    %v118 = vunpack.c.l.s4 1983009808
    %v119 = vunpack.c.0.s8 %v118
    %v120 = vlaneseq
    %v121 = vshrl.u32 %v120, 7
    %v122 = vsub.s32 %v119, %v121
    %v123 = vrot.slane %v116, %v122
    %v124 = vcombine.low %v98, %v99
    %v126 = vunpack.c.l.s4 1983009808
    %v127 = vunpack.c.0.s8 %v126
    %v128 = vlaneseq
    %v129 = vshrl.u32 %v128, 7
    %v130 = vsub.s32 %v127, %v129
    %v131 = vrot.slane %v124, %v130
    %v132 = vcombine.low %v107, %v115
    %v133 = vcombine.high %v107, %v115
    %v135 = vunpack.c.l.s4 1934713408
    %v136 = vunpack.c.0.s8 %v135
    %v137 = vlaneseq
    %v138 = vshrl.u32 %v137, 7
    %v139 = vsub.s32 %v136, %v138
    %v140 = vrot.slane %v132, %v139
    %v142 = vunpack.c.l.s4 1934713408
    %v143 = vunpack.c.0.s8 %v142
    %v144 = vlaneseq
    %v145 = vshrl.u32 %v144, 7
    %v146 = vsub.s32 %v143, %v145
    %v147 = vrot.slane %v133, %v146
    %v148 = vcombine.low %v123, %v131
    %v149 = vcombine.high %v123, %v131
    %v151 = vunpack.c.l.s4 1934713408
    %v152 = vunpack.c.0.s8 %v151
    %v153 = vlaneseq
    %v154 = vshrl.u32 %v153, 7
    %v155 = vsub.s32 %v152, %v154
    %v156 = vrot.slane %v148, %v155
    %v158 = vunpack.c.l.s4 1934713408
    %v159 = vunpack.c.0.s8 %v158
    %v160 = vlaneseq
    %v161 = vshrl.u32 %v160, 7
    %v162 = vsub.s32 %v159, %v161
    %v163 = vrot.slane %v149, %v162
    %v164 = vcombine.low %v140, %v156
    %v165 = vcombine.high %v140, %v156
    %v166 = vcombine.low %v147, %v163
    %v167 = vcombine.high %v147, %v163
    %v168 = vcombine.low %v164, %v166
    %v169 = vcombine.high %v164, %v166
    %v171 = vunpack.c.l.s4 1983009808
    %v172 = vunpack.c.0.s8 %v171
    %v173 = vlaneseq
    %v174 = vshrl.u32 %v173, 7
    %v175 = vsub.s32 %v172, %v174
    %v176 = vrot.slane %v168, %v175
    %v178 = vunpack.c.l.s4 1983009808
    %v179 = vunpack.c.0.s8 %v178
    %v180 = vlaneseq
    %v181 = vshrl.u32 %v180, 7
    %v182 = vsub.s32 %v179, %v181
    %v183 = vrot.slane %v169, %v182
    %v184 = vcombine.low %v165, %v167
    %v185 = vcombine.high %v165, %v167
    %v187 = vunpack.c.l.s4 1983009808
    %v188 = vunpack.c.0.s8 %v187
    %v189 = vlaneseq
    %v190 = vshrl.u32 %v189, 7
    %v191 = vsub.s32 %v188, %v190
    %v192 = vrot.slane %v184, %v191
    %v194 = vunpack.c.l.s4 1983009808
    %v195 = vunpack.c.0.s8 %v194
    %v196 = vlaneseq
    %v197 = vshrl.u32 %v196, 7
    %v198 = vsub.s32 %v195, %v197
    %v199 = vrot.slane %v185, %v198
    %v200 = vcombine.low %v176, %v192
    %v201 = vcombine.high %v176, %v192
    %v203 = vunpack.c.l.s4 1934713408
    %v204 = vunpack.c.0.s8 %v203
    %v205 = vlaneseq
    %v206 = vshrl.u32 %v205, 7
    %v207 = vsub.s32 %v204, %v206
    %v208 = vrot.slane %v200, %v207
    %v210 = vunpack.c.l.s4 1934713408
    %v211 = vunpack.c.0.s8 %v210
    %v212 = vlaneseq
    %v213 = vshrl.u32 %v212, 7
    %v214 = vsub.s32 %v211, %v213
    %v215 = vrot.slane %v201, %v214
    %v216 = vcombine.low %v183, %v199
    %v217 = vcombine.high %v183, %v199
    %v219 = vunpack.c.l.s4 1934713408
    %v220 = vunpack.c.0.s8 %v219
    %v221 = vlaneseq
    %v222 = vshrl.u32 %v221, 7
    %v223 = vsub.s32 %v220, %v222
    %v224 = vrot.slane %v216, %v223
    %v226 = vunpack.c.l.s4 1934713408
    %v227 = vunpack.c.0.s8 %v226
    %v228 = vlaneseq
    %v229 = vshrl.u32 %v228, 7
    %v230 = vsub.s32 %v227, %v229
    %v231 = vrot.slane %v217, %v230
    %v232 = vcombine.high %v208, 0.0
    %v233 = vcombine.high %v215, 0.0
    %v234 = vcombine.high %v224, 0.0
    %v235 = vcombine.high %v231, 0.0
    %237 = vrot.lane.b32.xlu0 %v232, 4
    %v238 = vpop.permute.xlu0 %237
    %241 = vrot.lane.b32.xlu0 %v215, 8
    %v242 = vpop.permute.xlu0 %241
    %245 = vrot.lane.b32.xlu0 %v233, 12
    %v246 = vpop.permute.xlu0 %245
    %249 = vrot.lane.b32.xlu0 %v224, 16
    %v250 = vpop.permute.xlu0 %249
    %253 = vrot.lane.b32.xlu0 %v234, 20
    %v254 = vpop.permute.xlu0 %253
    %257 = vrot.lane.b32.xlu0 %v231, 24
    %v258 = vpop.permute.xlu0 %257
    %261 = vrot.lane.b32.xlu0 %v235, 28
    %v262 = vpop.permute.xlu0 %261
    %vm264 = vcmask 31744
    %v265 = vsel %vm264, %v208, %v238
    %vm266 = vcmask 64512
    %v267 = vsel %vm266, %v265, %v242
    %vm268 = vcmask 97280
    %v269 = vsel %vm268, %v267, %v246
    %vm270 = vcmask 130048
    %v271 = vsel %vm270, %v269, %v250
    %vm272 = vcmask 162816
    %v273 = vsel %vm272, %v271, %v254
    %vm274 = vcmask 195584
    %v275 = vsel %vm274, %v273, %v258
    %vm276 = vcmask 228352
    %v277 = vsel %vm276, %v275, %v262
    %vm278 = vcmask 257024
    %279 = vst.msk [vmem:[#allocation5] sm:$0xf] %vm278, %v277
    // Predicated region
    $region10: #{tpu_custom_call.1} parent=1 // pred_check
      _
    $region11: #{tpu_custom_call.1} parent=1 // pred_check_branch
      %281 = sbr.rel (0) target = $region13
    $region12: #{tpu_custom_call.1} parent=1 // pred_region
      %s283 = ssub.s32 64, 64
      %284 = vsyncadd [#allocation4], %s283
      %s286 = sshll.u32 [#allocation5], 4
      %s287 = int_to_ptr.vmem [resolvable:$true] %s286
      %289 = dma.vmem_to_hbm [thread:$0]  %s287, 64, %s1, [#allocation4]
    $region13: #{tpu_custom_call.1} parent=1 // pred_fallthru
      _
    // Predicated region
    $region14: #{tpu_custom_call.1} parent=1 // pred_check
      _
    $region15: #{tpu_custom_call.1} parent=1 // pred_check_branch
      %291 = sbr.rel (0) target = $region17
    $region16: #{tpu_custom_call.1} parent=1 // pred_region
      %292 = dma.done [#allocation4], 64
    $region17: #{tpu_custom_call.1} parent=1 // pred_fallthru
      _
    %293 = vsyncpa [#allocation3], 1
    %294 = vsyncpa [#allocation4], 1

</llo_original>
